<compile_context>
chip_gen: v6e
topology: v6e:2x2x1
jax: 0.10.0
libtpu: 0.0.40
codegen_flags: <defaults>
</compile_context>

<pallas_src>
import functools

import jax
import jax.numpy as jnp
from jax.experimental import pallas as pl
from jax.experimental.pallas import tpu as pltpu

NEG_SLOPE = 0.01          # nn.LeakyReLU() default
HIDDEN = (512, 256, 128)
OUT_PAD = 128             # lane-dense padded output width
VMEM_CAP = 48 << 20       # keep under v7x's 64 MiB physical VMEM


def _round_up(n, m):
    return (n + m - 1) // m * m


def _epilogue_dtype():
    """bf16 epilogue on chips with a bf16 VPU (v6e/v7x), f32 otherwise (v4/v5)."""
    try:
        kind = jax.devices()[0].device_kind.lower()
    except Exception:
        return jnp.bfloat16
    if any(tag in kind for tag in ("v2", "v3", "v4", "v5")):
        return jnp.float32
    return jnp.bfloat16


def _dqn_kernel(x_ref, w1_ref, b1_ref, w2_ref, b2_ref, w3_ref, b3_ref,
                w4_ref, b4_ref, o_ref, *, epi_dtype):
    # One batch tile per grid step. bf16 inputs/weights on the MXU, f32
    # accumulation; bias add + LeakyReLU (mul+max) in `epi_dtype`; bf16 store.
    h = x_ref[...]
    layers = ((w1_ref, b1_ref, True),
              (w2_ref, b2_ref, True),
              (w3_ref, b3_ref, True),
              (w4_ref, b4_ref, False))
    for w_ref, b_ref, act in layers:
        acc = jnp.dot(h, w_ref[...], preferred_element_type=jnp.float32)
        v = acc.astype(epi_dtype) + b_ref[...]
        if act:
            v = jnp.maximum(v, NEG_SLOPE * v)     # LeakyReLU: mul + max on the VPU
            h = v.astype(jnp.bfloat16)
        else:
            h = v
    o_ref[...] = h.astype(o_ref.dtype)


def _choose_block(B, block_batch):
    """Pick the batch tile size BB (sublane/lane friendly, >=2 grid steps for v7x)."""
    b16 = _round_up(B, 16)
    if b16 <= 256:
        return b16                      # tiny batch: one tile, compute is negligible
    b128 = _round_up(B, 128)
    if b128 <= block_batch:
        # Whole batch would fit in one step -> split so both v7x TCs get work.
        return _round_up((b128 + 1) // 2, 128)
    return _round_up(block_batch, 128)


def _vmem_estimate(BB, obs, weight_bytes, bias_bytes):
    # Double-buffered x/out blocks + (possibly double-buffered) resident weights
    # + f32 accumulator / bf16 activation intermediates + headroom.
    block_bytes = BB * obs * 2 + BB * OUT_PAD * 2          # bf16 in, bf16 out
    interm_bytes = BB * (sum(HIDDEN) + OUT_PAD) * (4 + 2)  # f32 acc + bf16 act
    return 2 * (weight_bytes + bias_bytes + block_bytes) + interm_bytes + (8 << 20)


def dqn_forward(x, params, *, block_batch=2048):
    """x: [B, observation_size] f32. params: [(W[in,out], b[1,out])] * 4 (f32)."""
    (w1, b1), (w2, b2), (w3, b3), (w4, b4) = params
    B, obs = x.shape
    action_size = w4.shape[1]
    epi_dtype = _epilogue_dtype()

    # Lane-dense output: pad the final layer to 128 output columns (zeros).
    w4p = jnp.zeros((w4.shape[0], OUT_PAD), w4.dtype).at[:, :action_size].set(w4)
    b4p = jnp.zeros((1, OUT_PAD), b4.dtype).at[:, :action_size].set(b4)

    wts = [w.astype(jnp.bfloat16) for w in (w1, w2, w3, w4p)]
    bss = [b.astype(epi_dtype) for b in (b1, b2, b3, b4p)]
    weight_bytes = sum(int(w.size) * w.dtype.itemsize for w in wts)
    bias_bytes = sum(int(b.size) * b.dtype.itemsize for b in bss)

    # Batch tile: big enough to amortize grid-step overhead, small enough for the
    # v7x VMEM cap, and aligned to the bf16 packed-sublane / lane tiling.
    BB = _choose_block(B, block_batch)
    while BB > 256 and _vmem_estimate(BB, obs, weight_bytes, bias_bytes) > VMEM_CAP:
        BB = max(256, _round_up(BB // 2, 128))
    B_pad = _round_up(B, BB)

    xb = x.astype(jnp.bfloat16)
    if B_pad != B:
        xb = jnp.pad(xb, ((0, B_pad - B), (0, 0)))

    grid = (B_pad // BB,)

    def const_spec(shape):
        # Weights/biases: same block every grid step -> stay resident in VMEM
        # (Pallas skips the re-copy when the block index does not change).
        return pl.BlockSpec(shape, lambda i: (0, 0))

    in_specs = [pl.BlockSpec((BB, obs), lambda i: (i, 0))]
    for w, b in zip(wts, bss):
        in_specs.append(const_spec(w.shape))
        in_specs.append(const_spec(b.shape))
    out_spec = pl.BlockSpec((BB, OUT_PAD), lambda i: (i, 0))

    vmem_limit = min(VMEM_CAP, _vmem_estimate(BB, obs, weight_bytes, bias_bytes))

    kernel = functools.partial(_dqn_kernel, epi_dtype=epi_dtype)
    out = pl.pallas_call(
        kernel,
        out_shape=jax.ShapeDtypeStruct((B_pad, OUT_PAD), jnp.bfloat16),
        grid=grid,
        in_specs=in_specs,
        out_specs=out_spec,
        compiler_params=pltpu.CompilerParams(
            dimension_semantics=("parallel",),   # shard batch tiles across TCs (v7x)
            vmem_limit_bytes=int(vmem_limit),
        ),
    )(xb, wts[0], bss[0], wts[1], bss[1], wts[2], bss[2], wts[3], bss[3])

    return out[:B, :action_size].astype(jnp.float32)


def init_params(key, observation_size, action_size):
    """Deterministic init mimicking nn.Linear's U(-1/sqrt(fan_in), 1/sqrt(fan_in)).

    Weights stored as [in_features, out_features] so the kernel computes y = x @ W + b.
    """
    dims = [observation_size, *HIDDEN, action_size]
    params = []
    for i in range(4):
        fan_in, fan_out = dims[i], dims[i + 1]
        key, kw, kb = jax.random.split(key, 3)
        bound = 1.0 / jnp.sqrt(jnp.float32(fan_in))
        w = jax.random.uniform(kw, (fan_in, fan_out), jnp.float32, -bound, bound)
        b = jax.random.uniform(kb, (1, fan_out), jnp.float32, -bound, bound)
        params.append((w, b))
    return params


def reference_forward(x, params, epi_dtype):
    """Pure-JAX reference mirroring the kernel's bf16-weight / f32-accumulate math."""
    h = x.astype(jnp.bfloat16)
    for i, (w, b) in enumerate(params):
        acc = jnp.dot(h, w.astype(jnp.bfloat16), preferred_element_type=jnp.float32)
        v = acc.astype(epi_dtype) + b.astype(epi_dtype)
        if i < 3:
            v = jnp.maximum(v, NEG_SLOPE * v)
            h = v.astype(jnp.bfloat16)
        else:
            h = v.astype(jnp.bfloat16)
    return h.astype(jnp.float32)


if __name__ == "__main__":
    observation_size = 8
    action_size = 4
    batch = 2

    key = jax.random.PRNGKey(0)
    key, kx = jax.random.split(key)
    x = jax.random.normal(kx, (batch, observation_size), jnp.float32)
    params = init_params(key, observation_size, action_size)

    out = dqn_forward(x, params)
    out = jax.block_until_ready(out)

    ref = reference_forward(x, params, _epilogue_dtype())
    assert out.shape == (batch, action_size), out.shape
    assert jnp.allclose(out, ref, atol=2e-2, rtol=2e-2), "mismatch vs JAX reference"
    print("KERNEL_OK")
</pallas_src>

<mosaic_0001>
module attributes {stable_mosaic.version = 11 : i64} {
  func.func @_dqn_kernel(%arg0: i32, %arg1: memref<16x8xbf16, #tpu.memory_space<vmem>>, %arg2: memref<8x512xbf16, #tpu.memory_space<vmem>>, %arg3: memref<1x512xbf16, #tpu.memory_space<vmem>>, %arg4: memref<512x256xbf16, #tpu.memory_space<vmem>>, %arg5: memref<1x256xbf16, #tpu.memory_space<vmem>>, %arg6: memref<256x128xbf16, #tpu.memory_space<vmem>>, %arg7: memref<1x128xbf16, #tpu.memory_space<vmem>>, %arg8: memref<128x128xbf16, #tpu.memory_space<vmem>>, %arg9: memref<1x128xbf16, #tpu.memory_space<vmem>>, %arg10: memref<16x128xbf16, #tpu.memory_space<vmem>>) attributes {dimension_semantics = [#tpu.dimension_semantics<parallel>], iteration_bounds = array<i64: 1>, scalar_prefetch = 0 : i64, scratch_operands = 0 : i64, tpu.core_type = #tpu.core_type<tc>, window_params = [{transform_indices = @transform_0, window_bounds = array<i64: 16, 8>}, {pipeline_mode = #tpu.pipeline_mode<synchronous>, transform_indices = @transform_1, window_bounds = array<i64: 8, 512>}, {pipeline_mode = #tpu.pipeline_mode<synchronous>, transform_indices = @transform_2, window_bounds = array<i64: 1, 512>}, {pipeline_mode = #tpu.pipeline_mode<synchronous>, transform_indices = @transform_3, window_bounds = array<i64: 512, 256>}, {pipeline_mode = #tpu.pipeline_mode<synchronous>, transform_indices = @transform_4, window_bounds = array<i64: 1, 256>}, {pipeline_mode = #tpu.pipeline_mode<synchronous>, transform_indices = @transform_5, window_bounds = array<i64: 256, 128>}, {pipeline_mode = #tpu.pipeline_mode<synchronous>, transform_indices = @transform_6, window_bounds = array<i64: 1, 128>}, {pipeline_mode = #tpu.pipeline_mode<synchronous>, transform_indices = @transform_7, window_bounds = array<i64: 128, 128>}, {pipeline_mode = #tpu.pipeline_mode<synchronous>, transform_indices = @transform_8, window_bounds = array<i64: 1, 128>}, {transform_indices = @transform_9, window_bounds = array<i64: 16, 128>}]} {
    %c0 = arith.constant 0 : index
    %c0_0 = arith.constant 0 : index
    %0 = vector.load %arg1[%c0, %c0_0] : memref<16x8xbf16, #tpu.memory_space<vmem>>, vector<16x8xbf16>
    %c0_1 = arith.constant 0 : index
    %c0_2 = arith.constant 0 : index
    %1 = vector.load %arg2[%c0_1, %c0_2] : memref<8x512xbf16, #tpu.memory_space<vmem>>, vector<8x512xbf16>
    %cst = arith.constant dense<0.000000e+00> : vector<16x512xf32>
    %2 = tpu.matmul %0, %1, %cst {dimension_numbers = #tpu.dot_dimension_numbers<[1], [0], [0], [1], [0, 0, 1, 1], [], []>} : vector<16x8xbf16>, vector<8x512xbf16>, vector<16x512xf32> -> vector<16x512xf32>
    %3 = arith.truncf %2 : vector<16x512xf32> to vector<16x512xbf16>
    %c0_3 = arith.constant 0 : index
    %c0_4 = arith.constant 0 : index
    %4 = vector.load %arg3[%c0_3, %c0_4] : memref<1x512xbf16, #tpu.memory_space<vmem>>, vector<1x512xbf16>
    %5 = vector.broadcast %4 : vector<1x512xbf16> to vector<16x512xbf16>
    %6 = arith.addf %3, %5 : vector<16x512xbf16>
    %cst_5 = arith.constant 1.000980e-02 : bf16
    %7 = vector.broadcast %cst_5 : bf16 to vector<16x512xbf16>
    %8 = arith.mulf %7, %6 : vector<16x512xbf16>
    %9 = arith.maximumf %6, %8 : vector<16x512xbf16>
    %c0_6 = arith.constant 0 : index
    %c0_7 = arith.constant 0 : index
    %10 = vector.load %arg4[%c0_6, %c0_7] : memref<512x256xbf16, #tpu.memory_space<vmem>>, vector<512x256xbf16>
    %cst_8 = arith.constant dense<0.000000e+00> : vector<16x256xf32>
    %11 = tpu.matmul %9, %10, %cst_8 {dimension_numbers = #tpu.dot_dimension_numbers<[1], [0], [0], [1], [0, 0, 1, 1], [], []>} : vector<16x512xbf16>, vector<512x256xbf16>, vector<16x256xf32> -> vector<16x256xf32>
    %12 = arith.truncf %11 : vector<16x256xf32> to vector<16x256xbf16>
    %c0_9 = arith.constant 0 : index
    %c0_10 = arith.constant 0 : index
    %13 = vector.load %arg5[%c0_9, %c0_10] : memref<1x256xbf16, #tpu.memory_space<vmem>>, vector<1x256xbf16>
    %14 = vector.broadcast %13 : vector<1x256xbf16> to vector<16x256xbf16>
    %15 = arith.addf %12, %14 : vector<16x256xbf16>
    %cst_11 = arith.constant 1.000980e-02 : bf16
    %16 = vector.broadcast %cst_11 : bf16 to vector<16x256xbf16>
    %17 = arith.mulf %16, %15 : vector<16x256xbf16>
    %18 = arith.maximumf %15, %17 : vector<16x256xbf16>
    %c0_12 = arith.constant 0 : index
    %c0_13 = arith.constant 0 : index
    %19 = vector.load %arg6[%c0_12, %c0_13] : memref<256x128xbf16, #tpu.memory_space<vmem>>, vector<256x128xbf16>
    %cst_14 = arith.constant dense<0.000000e+00> : vector<16x128xf32>
    %20 = tpu.matmul %18, %19, %cst_14 {dimension_numbers = #tpu.dot_dimension_numbers<[1], [0], [0], [1], [0, 0, 1, 1], [], []>} : vector<16x256xbf16>, vector<256x128xbf16>, vector<16x128xf32> -> vector<16x128xf32>
    %21 = arith.truncf %20 : vector<16x128xf32> to vector<16x128xbf16>
    %c0_15 = arith.constant 0 : index
    %c0_16 = arith.constant 0 : index
    %22 = vector.load %arg7[%c0_15, %c0_16] : memref<1x128xbf16, #tpu.memory_space<vmem>>, vector<1x128xbf16>
    %23 = vector.broadcast %22 : vector<1x128xbf16> to vector<16x128xbf16>
    %24 = arith.addf %21, %23 : vector<16x128xbf16>
    %cst_17 = arith.constant 1.000980e-02 : bf16
    %25 = vector.broadcast %cst_17 : bf16 to vector<16x128xbf16>
    %26 = arith.mulf %25, %24 : vector<16x128xbf16>
    %27 = arith.maximumf %24, %26 : vector<16x128xbf16>
    %c0_18 = arith.constant 0 : index
    %c0_19 = arith.constant 0 : index
    %28 = vector.load %arg8[%c0_18, %c0_19] : memref<128x128xbf16, #tpu.memory_space<vmem>>, vector<128x128xbf16>
    %cst_20 = arith.constant dense<0.000000e+00> : vector<16x128xf32>
    %29 = tpu.matmul %27, %28, %cst_20 {dimension_numbers = #tpu.dot_dimension_numbers<[1], [0], [0], [1], [0, 0, 1, 1], [], []>} : vector<16x128xbf16>, vector<128x128xbf16>, vector<16x128xf32> -> vector<16x128xf32>
    %30 = arith.truncf %29 : vector<16x128xf32> to vector<16x128xbf16>
    %c0_21 = arith.constant 0 : index
    %c0_22 = arith.constant 0 : index
    %31 = vector.load %arg9[%c0_21, %c0_22] : memref<1x128xbf16, #tpu.memory_space<vmem>>, vector<1x128xbf16>
    %32 = vector.broadcast %31 : vector<1x128xbf16> to vector<16x128xbf16>
    %33 = arith.addf %30, %32 : vector<16x128xbf16>
    %c0_23 = arith.constant 0 : index
    %c0_24 = arith.constant 0 : index
    %34 = vector.load %arg10[%c0_23, %c0_24] : memref<16x128xbf16, #tpu.memory_space<vmem>>, vector<16x128xbf16>
    tpu.vector_store %arg10[%c0_23, %c0_24], %33 {strides = array<i32>} : memref<16x128xbf16, #tpu.memory_space<vmem>>, vector<16x128xbf16>,
    return
  }
  func.func @transform_0(%arg0: i32) -> (i32, i32) {
    %c0_i32 = arith.constant 0 : i32
    %c0_i32_0 = arith.constant 0 : i32
    return %arg0, %c0_i32 : i32, i32
  }
  func.func @transform_1(%arg0: i32) -> (i32, i32) {
    %c0_i32 = arith.constant 0 : i32
    %c0_i32_0 = arith.constant 0 : i32
    %c0_i32_1 = arith.constant 0 : i32
    return %c0_i32, %c0_i32_0 : i32, i32
  }
  func.func @transform_2(%arg0: i32) -> (i32, i32) {
    %c0_i32 = arith.constant 0 : i32
    %c0_i32_0 = arith.constant 0 : i32
    %c0_i32_1 = arith.constant 0 : i32
    return %c0_i32, %c0_i32_0 : i32, i32
  }
  func.func @transform_3(%arg0: i32) -> (i32, i32) {
    %c0_i32 = arith.constant 0 : i32
    %c0_i32_0 = arith.constant 0 : i32
    %c0_i32_1 = arith.constant 0 : i32
    return %c0_i32, %c0_i32_0 : i32, i32
  }
  func.func @transform_4(%arg0: i32) -> (i32, i32) {
    %c0_i32 = arith.constant 0 : i32
    %c0_i32_0 = arith.constant 0 : i32
    %c0_i32_1 = arith.constant 0 : i32
    return %c0_i32, %c0_i32_0 : i32, i32
  }
  func.func @transform_5(%arg0: i32) -> (i32, i32) {
    %c0_i32 = arith.constant 0 : i32
    %c0_i32_0 = arith.constant 0 : i32
    %c0_i32_1 = arith.constant 0 : i32
    return %c0_i32, %c0_i32_0 : i32, i32
  }
  func.func @transform_6(%arg0: i32) -> (i32, i32) {
    %c0_i32 = arith.constant 0 : i32
    %c0_i32_0 = arith.constant 0 : i32
    %c0_i32_1 = arith.constant 0 : i32
    return %c0_i32, %c0_i32_0 : i32, i32
  }
  func.func @transform_7(%arg0: i32) -> (i32, i32) {
    %c0_i32 = arith.constant 0 : i32
    %c0_i32_0 = arith.constant 0 : i32
    %c0_i32_1 = arith.constant 0 : i32
    return %c0_i32, %c0_i32_0 : i32, i32
  }
  func.func @transform_8(%arg0: i32) -> (i32, i32) {
    %c0_i32 = arith.constant 0 : i32
    %c0_i32_0 = arith.constant 0 : i32
    %c0_i32_1 = arith.constant 0 : i32
    return %c0_i32, %c0_i32_0 : i32, i32
  }
  func.func @transform_9(%arg0: i32) -> (i32, i32) {
    %c0_i32 = arith.constant 0 : i32
    %c0_i32_0 = arith.constant 0 : i32
    return %arg0, %c0_i32 : i32, i32
  }
}

</mosaic_0001>

<llo_original>
// kernel: tpu_custom_call.1
$region0: #{tpu_custom_call.1}
  #allocation0 [shape = 'u32[]', space=smem, size = 0x4, offset = 0x4, fixed_abs, tag = 'smem constant byte address 0x4 - core index']
  #allocation1 [shape = 'u32[144,128]{1,0:T(1,128)}', space=vmem, size = 0x12000, scoped, tag = 'internal scratch']
  %s0 = inlined_call_operand.vmem [shape: bf16[16,8], index: 0, kind: input, shape index: {}]
  %s1 = inlined_call_operand.hbm [shape: bf16[8,512], index: 1, kind: input, shape index: {}]
  %s2 = inlined_call_operand.vmem [shape: bf16[1,512], index: 2, kind: input, shape index: {}]
  %s3 = inlined_call_operand.hbm [shape: bf16[512,256], index: 3, kind: input, shape index: {}]
  %s4 = inlined_call_operand.vmem [shape: bf16[1,256], index: 4, kind: input, shape index: {}]
  %s5 = inlined_call_operand.hbm [shape: bf16[256,128], index: 5, kind: input, shape index: {}]
  %s6 = inlined_call_operand.vmem [shape: bf16[1,128], index: 6, kind: input, shape index: {}]
  %s7 = inlined_call_operand.hbm [shape: bf16[128,128], index: 7, kind: input, shape index: {}]
  %s8 = inlined_call_operand.vmem [shape: bf16[1,128], index: 8, kind: input, shape index: {}]
  %s9 = inlined_call_operand.hbm [shape: bf16[16,128], index: 9, kind: output, shape index: {}]
  %s10 = sld [smem:[#allocation0]]
  $region62: #{tpu_custom_call.1} parent=0
    _
  %s12 = ssub.s32 1, %s10
  %s13 = scalar_select 0, %s12, %s10
  $region1: #{tpu_custom_call.1} parent=0
    #allocation2 [shape = 'u8[8192]{0}', space=vmem, size = 0x2000, scoped, tag = 'input window, operand 1, single buffered']
    #allocation3 [shape = 's32[1]{0}', space=sflag, size = 0x4, scoped, tag = 'scoped memory for tpu_custom_call.1']
    #allocation4 [shape = 's32[1]{0}', space=sflag, size = 0x4, scoped, tag = 'scoped memory for tpu_custom_call.1']
    #allocation5 [shape = 'u8[262144]{0}', space=vmem, size = 0x40000, scoped, tag = 'input window, operand 3, single buffered']
    #allocation6 [shape = 's32[1]{0}', space=sflag, size = 0x4, scoped, tag = 'scoped memory for tpu_custom_call.1']
    #allocation7 [shape = 'u8[65536]{0}', space=vmem, size = 0x10000, scoped, tag = 'input window, operand 5, single buffered']
    #allocation8 [shape = 'u8[32768]{0}', space=vmem, size = 0x8000, scoped, tag = 'input window, operand 7, single buffered']
    #allocation9 [shape = 's32[1]{0}', space=sflag, size = 0x4, scoped, tag = 'scoped memory for tpu_custom_call.1']
    #allocation10 [shape = 'u8[4096]{0}', space=vmem, size = 0x1000, scoped, tag = 'output window, operand 0, single buffered']
    %14 = vsyncpa [#allocation3], 0
    %15 = vsyncpa [#allocation6], 0
    %16 = vsyncpa [#allocation9], 0
    %17 = vsyncpa [#allocation4], 0
    // Predicated region
    $region2: #{tpu_custom_call.1} parent=1 // pred_check
      _
    $region3: #{tpu_custom_call.1} parent=1 // pred_check_branch
      %19 = sbr.rel (0) target = $region5
    $region4: #{tpu_custom_call.1} parent=1 // pred_region
      _
    $region5: #{tpu_custom_call.1} parent=1 // pred_fallthru
      _
    // Predicated region
    $region6: #{tpu_custom_call.1} parent=1 // pred_check
      _
    $region7: #{tpu_custom_call.1} parent=1 // pred_check_branch
      %21 = sbr.rel (0) target = $region9
    $region8: #{tpu_custom_call.1} parent=1 // pred_region
      %s23 = ssub.s32 256, 256
      %24 = vsyncadd [#allocation3], %s23
      %s26 = sshll.u32 [#allocation2], 4
      %s27 = int_to_ptr.vmem [resolvable:$true] %s26
      %29 = dma.hbm_to_vmem [thread:$0]  %s1, 256, %s27, [#allocation3]
    $region9: #{tpu_custom_call.1} parent=1 // pred_fallthru
      _
    // Predicated region
    $region10: #{tpu_custom_call.1} parent=1 // pred_check
      _
    $region11: #{tpu_custom_call.1} parent=1 // pred_check_branch
      %31 = sbr.rel (0) target = $region13
    $region12: #{tpu_custom_call.1} parent=1 // pred_region
      _
    $region13: #{tpu_custom_call.1} parent=1 // pred_fallthru
      _
    // Predicated region
    $region14: #{tpu_custom_call.1} parent=1 // pred_check
      _
    $region15: #{tpu_custom_call.1} parent=1 // pred_check_branch
      %33 = sbr.rel (0) target = $region17
    $region16: #{tpu_custom_call.1} parent=1 // pred_region
      %s35 = ssub.s32 8192, 8192
      %36 = vsyncadd [#allocation6], %s35
      %s37 = sshll.u32 [#allocation5], 4
      %s38 = int_to_ptr.vmem [resolvable:$true] %s37
      %43 = dma.hbm_to_vmem [thread:$0]  %s3, 8192, %s38, [#allocation6], 128, 128, 8
    $region17: #{tpu_custom_call.1} parent=1 // pred_fallthru
      _
    // Predicated region
    $region18: #{tpu_custom_call.1} parent=1 // pred_check
      _
    $region19: #{tpu_custom_call.1} parent=1 // pred_check_branch
      %45 = sbr.rel (0) target = $region21
    $region20: #{tpu_custom_call.1} parent=1 // pred_region
      _
    $region21: #{tpu_custom_call.1} parent=1 // pred_fallthru
      _
    // Predicated region
    $region22: #{tpu_custom_call.1} parent=1 // pred_check
      _
    $region23: #{tpu_custom_call.1} parent=1 // pred_check_branch
      %47 = sbr.rel (0) target = $region25
    $region24: #{tpu_custom_call.1} parent=1 // pred_region
      %s49 = ssub.s32 2048, 2048
      %50 = vsyncadd [#allocation6], %s49
      %s51 = sshll.u32 [#allocation7], 4
      %s52 = int_to_ptr.vmem [resolvable:$true] %s51
      %57 = dma.hbm_to_vmem [thread:$0]  %s5, 2048, %s52, [#allocation6], 64, 64, 4
    $region25: #{tpu_custom_call.1} parent=1 // pred_fallthru
      _
    // Predicated region
    $region26: #{tpu_custom_call.1} parent=1 // pred_check
      _
    $region27: #{tpu_custom_call.1} parent=1 // pred_check_branch
      %59 = sbr.rel (0) target = $region29
    $region28: #{tpu_custom_call.1} parent=1 // pred_region
      _
    $region29: #{tpu_custom_call.1} parent=1 // pred_fallthru
      _
    // Predicated region
    $region30: #{tpu_custom_call.1} parent=1 // pred_check
      _
    $region31: #{tpu_custom_call.1} parent=1 // pred_check_branch
      %61 = sbr.rel (0) target = $region33
    $region32: #{tpu_custom_call.1} parent=1 // pred_region
      %s63 = ssub.s32 1024, 1024
      %64 = vsyncadd [#allocation9], %s63
      %s65 = sshll.u32 [#allocation8], 4
      %s66 = int_to_ptr.vmem [resolvable:$true] %s65
      %71 = dma.hbm_to_vmem [thread:$0]  %s7, 1024, %s66, [#allocation9], 64, 64, 4
    $region33: #{tpu_custom_call.1} parent=1 // pred_fallthru
      _
    // Predicated region
    $region34: #{tpu_custom_call.1} parent=1 // pred_check
      _
    $region35: #{tpu_custom_call.1} parent=1 // pred_check_branch
      %73 = sbr.rel (0) target = $region37
    $region36: #{tpu_custom_call.1} parent=1 // pred_region
      _
    $region37: #{tpu_custom_call.1} parent=1 // pred_fallthru
      _
    // Predicated region
    $region38: #{tpu_custom_call.1} parent=1 // pred_check
      _
    $region39: #{tpu_custom_call.1} parent=1 // pred_check_branch
      %75 = sbr.rel (0) target = $region41
    $region40: #{tpu_custom_call.1} parent=1 // pred_region
      %76 = dma.done [#allocation3], 256
    $region41: #{tpu_custom_call.1} parent=1 // pred_fallthru
      _
    // Predicated region
    $region42: #{tpu_custom_call.1} parent=1 // pred_check
      _
    $region43: #{tpu_custom_call.1} parent=1 // pred_check_branch
      %78 = sbr.rel (0) target = $region45
    $region44: #{tpu_custom_call.1} parent=1 // pred_region
      %79 = dma.done [#allocation6], 8192
    $region45: #{tpu_custom_call.1} parent=1 // pred_fallthru
      _
    // Predicated region
    $region46: #{tpu_custom_call.1} parent=1 // pred_check
      _
    $region47: #{tpu_custom_call.1} parent=1 // pred_check_branch
      %81 = sbr.rel (0) target = $region49
    $region48: #{tpu_custom_call.1} parent=1 // pred_region
      %82 = dma.done [#allocation6], 2048
    $region49: #{tpu_custom_call.1} parent=1 // pred_fallthru
      _
    // Predicated region
    $region50: #{tpu_custom_call.1} parent=1 // pred_check
      _
    $region51: #{tpu_custom_call.1} parent=1 // pred_check_branch
      %84 = sbr.rel (0) target = $region53
    $region52: #{tpu_custom_call.1} parent=1 // pred_region
      %85 = dma.done [#allocation9], 1024
    $region53: #{tpu_custom_call.1} parent=1 // pred_fallthru
      _
    %v88 = vld [vmem:[%s0] sm:$0xf]
    %v89 = vld [vmem:[%s0 + $0x4] sm:$0xf]
    %v90 = vld [vmem:[#allocation2] sm:$0xff]
    %v91 = vld [vmem:[#allocation2 + $0x8] sm:$0xff]
    %v94 = vunpack.c.l.b16 %v88
    %v95 = vunpack.c.l.b16 %v89
    %v96 = vpack.c.b16 %v95, %v94
    %v99 = vunpack.c.l.b16 %v90
    %v100 = vunpack.c.h.b16 %v90
    %v101 = vunpack.c.l.b16 %v91
    %v102 = vunpack.c.h.b16 %v91
    %v103 = vpack.c.b16 %v99, %v99
    %v104 = vpack.c.b16 %v100, %v100
    %v105 = vpack.c.b16 %v101, %v101
    %v106 = vpack.c.b16 %v102, %v102
    %vm107 = vcmask 64512
    %v109 = vsel %vm107, %v96, 0
    %vm111 = vcmask 1043456
    %v113 = vsel %vm111, %v103, 0
    %v116 = vsel %vm111, %v104, 0
    %v119 = vsel %vm111, %v105, 0
    %v122 = vsel %vm111, %v106, 0
    %124 = vmatprep.subr.bf16.mxu0 0
    %125 = vmatpush1.bf16.msra.mxu0 0
    %126 = vmatprep.subr.bf16.mxu0 0
    %127 = vmatpush1.bf16.msra.mxu0 0
    %128 = vmatprep.subr.bf16.mxu0 0
    %129 = vmatpush1.bf16.msra.mxu0 0
    %130 = vmatprep.subr.bf16.mxu0 0
    %131 = vmatpush1.bf16.msra.mxu0 0
    %132 = vmatprep.subr.bf16.mxu0 0
    %133 = vmatpush1.bf16.msra.mxu0 0
    %134 = vmatprep.subr.bf16.mxu0 0
    %135 = vmatpush1.bf16.msra.mxu0 0
    %136 = vmatprep.subr.bf16.mxu0 0
    %137 = vmatpush1.bf16.msra.mxu0 0
    %138 = vmatprep.subr.bf16.mxu0 %v116
    %139 = vmatpush1.bf16.msra.mxu0 %v113
    %140 = vmatprep.subr.bf16.mxu0 0
    %141 = vmatpush2.bf16.msra.mxu0 0
    %142 = vmatprep.subr.bf16.mxu0 0
    %143 = vmatpush2.bf16.msra.mxu0 0
    %144 = vmatprep.subr.bf16.mxu0 0
    %145 = vmatpush2.bf16.msra.mxu0 0
    %146 = vmatprep.subr.bf16.mxu0 0
    %147 = vmatpush2.bf16.msra.mxu0 0
    %148 = vmatprep.subr.bf16.mxu0 0
    %149 = vmatpush2.bf16.msra.mxu0 0
    %150 = vmatprep.subr.bf16.mxu0 0
    %151 = vmatpush2.bf16.msra.mxu0 0
    %152 = vmatprep.subr.bf16.mxu0 0
    %153 = vmatpush2.bf16.msra.mxu0 0
    %154 = vmatprep.subr.bf16.mxu0 0
    %155 = vmatpush2.bf16.msra.mxu0 0
    %156 = vmatprep.mubr.bf16.mxu0 0
    %157 = vmatmul.mubr.bf16.gmra.mxu0 %v109
    %v158 = vpop.f32.mrf.mxu0
    %v159 = vadd.f32 0.0, %v158
    %v160 = vpop.f32.mrf.mxu0
    %v161 = vadd.f32 0.0, %v160
    %v162 = vpop.f32.mrf.mxu0
    %v163 = vadd.f32 0.0, %v162
    %v164 = vpop.f32.mrf.mxu0
    %v165 = vadd.f32 0.0, %v164
    %166 = vdwg.mxu0
    %167 = vmatprep.subr.bf16.mxu0 0
    %168 = vmatpush1.bf16.msra.mxu0 0
    %169 = vmatprep.subr.bf16.mxu0 0
    %170 = vmatpush1.bf16.msra.mxu0 0
    %171 = vmatprep.subr.bf16.mxu0 0
    %172 = vmatpush1.bf16.msra.mxu0 0
    %173 = vmatprep.subr.bf16.mxu0 0
    %174 = vmatpush1.bf16.msra.mxu0 0
    %175 = vmatprep.subr.bf16.mxu0 0
    %176 = vmatpush1.bf16.msra.mxu0 0
    %177 = vmatprep.subr.bf16.mxu0 0
    %178 = vmatpush1.bf16.msra.mxu0 0
    %179 = vmatprep.subr.bf16.mxu0 0
    %180 = vmatpush1.bf16.msra.mxu0 0
    %181 = vmatprep.subr.bf16.mxu0 %v122
    %182 = vmatpush1.bf16.msra.mxu0 %v119
    %183 = vmatprep.subr.bf16.mxu0 0
    %184 = vmatpush2.bf16.msra.mxu0 0
    %185 = vmatprep.subr.bf16.mxu0 0
    %186 = vmatpush2.bf16.msra.mxu0 0
    %187 = vmatprep.subr.bf16.mxu0 0
    %188 = vmatpush2.bf16.msra.mxu0 0
    %189 = vmatprep.subr.bf16.mxu0 0
    %190 = vmatpush2.bf16.msra.mxu0 0
    %191 = vmatprep.subr.bf16.mxu0 0
    %192 = vmatpush2.bf16.msra.mxu0 0
    %193 = vmatprep.subr.bf16.mxu0 0
    %194 = vmatpush2.bf16.msra.mxu0 0
    %195 = vmatprep.subr.bf16.mxu0 0
    %196 = vmatpush2.bf16.msra.mxu0 0
    %197 = vmatprep.subr.bf16.mxu0 0
    %198 = vmatpush2.bf16.msra.mxu0 0
    %199 = vmatprep.mubr.bf16.mxu0 0
    %200 = vmatmul.mubr.bf16.gmra.mxu0 %v109
    %v201 = vpop.f32.mrf.mxu0
    %v202 = vadd.f32 0.0, %v201
    %v203 = vpop.f32.mrf.mxu0
    %v204 = vadd.f32 0.0, %v203
    %v205 = vpop.f32.mrf.mxu0
    %v206 = vadd.f32 0.0, %v205
    %v207 = vpop.f32.mrf.mxu0
    %v208 = vadd.f32 0.0, %v207
    %209 = vdwg.mxu0
    %v210 = vpack.c.bf16 %v163, %v159
    %v211 = vpack.c.bf16 %v165, %v161
    %v212 = vpack.c.bf16 %v206, %v202
    %v213 = vpack.c.bf16 %v208, %v204
    %v214 = vld [vmem:[%s2] sm:$0xf]
    %v217 = vunpack.c.l.s4 1966171168
    %v218 = vunpack.c.0.s8 %v217
    %v219 = vlaneseq
    %v220 = vshrl.u32 %v219, 7
    %v221 = vsub.s32 %v218, %v220
    %v222 = vrot.slane %v214, %v221
    %v223 = vcombine.high %v222, %v222
    %v225 = vunpack.c.l.s4 1966171168
    %v226 = vunpack.c.0.s8 %v225
    %v227 = vlaneseq
    %v228 = vshrl.u32 %v227, 7
    %v229 = vsub.s32 %v226, %v228
    %v230 = vrot.slane %v222, %v229
    %v232 = vunpack.c.l.s4 1966171168
    %v233 = vunpack.c.0.s8 %v232
    %v234 = vlaneseq
    %v235 = vshrl.u32 %v234, 7
    %v236 = vsub.s32 %v233, %v235
    %v237 = vrot.slane %v223, %v236
    %v238 = vcombine.high %v230, %v230
    %v239 = vcombine.high %v237, %v237
    %v241 = vpack.i.b16 %v230, %v230
    %v243 = vlaneseq
    %v244 = vshrl.u32 %v243, 7
    %v245 = vsub.s32 0, %v244
    %v246 = vrot.slane %v241, %v245
    %v248 = vpack.i.b16 %v237, %v237
    %v250 = vlaneseq
    %v251 = vshrl.u32 %v250, 7
    %v252 = vsub.s32 0, %v251
    %v253 = vrot.slane %v248, %v252
    %v255 = vpack.i.b16 %v238, %v238
    %v257 = vlaneseq
    %v258 = vshrl.u32 %v257, 7
    %v259 = vsub.s32 0, %v258
    %v260 = vrot.slane %v255, %v259
    %v262 = vpack.i.b16 %v239, %v239
    %v264 = vlaneseq
    %v265 = vshrl.u32 %v264, 7
    %v266 = vsub.s32 0, %v265
    %v267 = vrot.slane %v262, %v266
    %v268 = vadd.bf16 %v210, %v246
    %v269 = vadd.bf16 %v211, %v253
    %v270 = vadd.bf16 %v212, %v260
    %v271 = vadd.bf16 %v213, %v267
    %v272 = vmul.bf16 %v268, 1009007652
    %v273 = vmul.bf16 %v269, 1009007652
    %v274 = vmul.bf16 %v270, 1009007652
    %v275 = vmul.bf16 %v271, 1009007652
    %v276 = vmax.bf16 %v268, %v272
    %v277 = vmax.bf16 %v269, %v273
    %v278 = vmax.bf16 %v270, %v274
    %v279 = vmax.bf16 %v271, %v275
    %v280 = vld [vmem:[#allocation5] sm:$0xff]
    %v281 = vld [vmem:[#allocation5 + $0x8] sm:$0xff]
    %v282 = vld [vmem:[#allocation5 + $0x10] sm:$0xff]
    %v283 = vld [vmem:[#allocation5 + $0x18] sm:$0xff]
    %v284 = vld [vmem:[#allocation5 + $0x20] sm:$0xff]
    %v285 = vld [vmem:[#allocation5 + $0x28] sm:$0xff]
    %v286 = vld [vmem:[#allocation5 + $0x30] sm:$0xff]
    %v287 = vld [vmem:[#allocation5 + $0x38] sm:$0xff]
    %v288 = vld [vmem:[#allocation5 + $0x40] sm:$0xff]
    %v289 = vld [vmem:[#allocation5 + $0x48] sm:$0xff]
    %v290 = vld [vmem:[#allocation5 + $0x50] sm:$0xff]
    %v291 = vld [vmem:[#allocation5 + $0x58] sm:$0xff]
    %v292 = vld [vmem:[#allocation5 + $0x60] sm:$0xff]
    %v293 = vld [vmem:[#allocation5 + $0x68] sm:$0xff]
    %v294 = vld [vmem:[#allocation5 + $0x70] sm:$0xff]
    %v295 = vld [vmem:[#allocation5 + $0x78] sm:$0xff]
    %v296 = vld [vmem:[#allocation5 + $0x80] sm:$0xff]
    %v297 = vld [vmem:[#allocation5 + $0x88] sm:$0xff]
    %v298 = vld [vmem:[#allocation5 + $0x90] sm:$0xff]
    %v299 = vld [vmem:[#allocation5 + $0x98] sm:$0xff]
    %v300 = vld [vmem:[#allocation5 + $0xa0] sm:$0xff]
    %v301 = vld [vmem:[#allocation5 + $0xa8] sm:$0xff]
    %v302 = vld [vmem:[#allocation5 + $0xb0] sm:$0xff]
    %v303 = vld [vmem:[#allocation5 + $0xb8] sm:$0xff]
    %v304 = vld [vmem:[#allocation5 + $0xc0] sm:$0xff]
    %v305 = vld [vmem:[#allocation5 + $0xc8] sm:$0xff]
    %v306 = vld [vmem:[#allocation5 + $0xd0] sm:$0xff]
    %v307 = vld [vmem:[#allocation5 + $0xd8] sm:$0xff]
    %v308 = vld [vmem:[#allocation5 + $0xe0] sm:$0xff]
    %v309 = vld [vmem:[#allocation5 + $0xe8] sm:$0xff]
    %v310 = vld [vmem:[#allocation5 + $0xf0] sm:$0xff]
    %v311 = vld [vmem:[#allocation5 + $0xf8] sm:$0xff]
    %v312 = vld [vmem:[#allocation5 + $0x100] sm:$0xff]
    %v313 = vld [vmem:[#allocation5 + $0x108] sm:$0xff]
    %v314 = vld [vmem:[#allocation5 + $0x110] sm:$0xff]
    %v315 = vld [vmem:[#allocation5 + $0x118] sm:$0xff]
    %v316 = vld [vmem:[#allocation5 + $0x120] sm:$0xff]
    %v317 = vld [vmem:[#allocation5 + $0x128] sm:$0xff]
    %v318 = vld [vmem:[#allocation5 + $0x130] sm:$0xff]
    %v319 = vld [vmem:[#allocation5 + $0x138] sm:$0xff]
    %v320 = vld [vmem:[#allocation5 + $0x140] sm:$0xff]
    %v321 = vld [vmem:[#allocation5 + $0x148] sm:$0xff]
    %v322 = vld [vmem:[#allocation5 + $0x150] sm:$0xff]
    %v323 = vld [vmem:[#allocation5 + $0x158] sm:$0xff]
    %v324 = vld [vmem:[#allocation5 + $0x160] sm:$0xff]
    %v325 = vld [vmem:[#allocation5 + $0x168] sm:$0xff]
    %v326 = vld [vmem:[#allocation5 + $0x170] sm:$0xff]
    %v327 = vld [vmem:[#allocation5 + $0x178] sm:$0xff]
    %v328 = vld [vmem:[#allocation5 + $0x180] sm:$0xff]
    %v329 = vld [vmem:[#allocation5 + $0x188] sm:$0xff]
    %v330 = vld [vmem:[#allocation5 + $0x190] sm:$0xff]
    %v331 = vld [vmem:[#allocation5 + $0x198] sm:$0xff]
    %v332 = vld [vmem:[#allocation5 + $0x1a0] sm:$0xff]
    %v333 = vld [vmem:[#allocation5 + $0x1a8] sm:$0xff]
    %v334 = vld [vmem:[#allocation5 + $0x1b0] sm:$0xff]
    %v335 = vld [vmem:[#allocation5 + $0x1b8] sm:$0xff]
    %v336 = vld [vmem:[#allocation5 + $0x1c0] sm:$0xff]
    %v337 = vld [vmem:[#allocation5 + $0x1c8] sm:$0xff]
    %v338 = vld [vmem:[#allocation5 + $0x1d0] sm:$0xff]
    %v339 = vld [vmem:[#allocation5 + $0x1d8] sm:$0xff]
    %v340 = vld [vmem:[#allocation5 + $0x1e0] sm:$0xff]
    %v341 = vld [vmem:[#allocation5 + $0x1e8] sm:$0xff]
    %v342 = vld [vmem:[#allocation5 + $0x1f0] sm:$0xff]
    %v343 = vld [vmem:[#allocation5 + $0x1f8] sm:$0xff]
    %v408 = vunpack.c.l.b16 %v280
    %v409 = vunpack.c.h.b16 %v280
    %v410 = vunpack.c.l.b16 %v281
    %v411 = vunpack.c.h.b16 %v281
    %v412 = vunpack.c.l.b16 %v282
    %v413 = vunpack.c.h.b16 %v282
    %v414 = vunpack.c.l.b16 %v283
    %v415 = vunpack.c.h.b16 %v283
    %v416 = vunpack.c.l.b16 %v284
    %v417 = vunpack.c.h.b16 %v284
    %v418 = vunpack.c.l.b16 %v285
    %v419 = vunpack.c.h.b16 %v285
    %v420 = vunpack.c.l.b16 %v286
    %v421 = vunpack.c.h.b16 %v286
    %v422 = vunpack.c.l.b16 %v287
    %v423 = vunpack.c.h.b16 %v287
    %v424 = vunpack.c.l.b16 %v288
    %v425 = vunpack.c.h.b16 %v288
    %v426 = vunpack.c.l.b16 %v289
    %v427 = vunpack.c.h.b16 %v289
    %v428 = vunpack.c.l.b16 %v290
    %v429 = vunpack.c.h.b16 %v290
    %v430 = vunpack.c.l.b16 %v291
    %v431 = vunpack.c.h.b16 %v291
    %v432 = vunpack.c.l.b16 %v292
    %v433 = vunpack.c.h.b16 %v292
    %v434 = vunpack.c.l.b16 %v293
    %v435 = vunpack.c.h.b16 %v293
    %v436 = vunpack.c.l.b16 %v294
    %v437 = vunpack.c.h.b16 %v294
    %v438 = vunpack.c.l.b16 %v295
    %v439 = vunpack.c.h.b16 %v295
    %v440 = vunpack.c.l.b16 %v296
    %v441 = vunpack.c.h.b16 %v296
    %v442 = vunpack.c.l.b16 %v297
    %v443 = vunpack.c.h.b16 %v297
    %v444 = vunpack.c.l.b16 %v298
    %v445 = vunpack.c.h.b16 %v298
    %v446 = vunpack.c.l.b16 %v299
    %v447 = vunpack.c.h.b16 %v299
    %v448 = vunpack.c.l.b16 %v300
    %v449 = vunpack.c.h.b16 %v300
    %v450 = vunpack.c.l.b16 %v301
    %v451 = vunpack.c.h.b16 %v301
    %v452 = vunpack.c.l.b16 %v302
    %v453 = vunpack.c.h.b16 %v302
    %v454 = vunpack.c.l.b16 %v303
    %v455 = vunpack.c.h.b16 %v303
    %v456 = vunpack.c.l.b16 %v304
    %v457 = vunpack.c.h.b16 %v304
    %v458 = vunpack.c.l.b16 %v305
    %v459 = vunpack.c.h.b16 %v305
    %v460 = vunpack.c.l.b16 %v306
    %v461 = vunpack.c.h.b16 %v306
    %v462 = vunpack.c.l.b16 %v307
    %v463 = vunpack.c.h.b16 %v307
    %v464 = vunpack.c.l.b16 %v308
    %v465 = vunpack.c.h.b16 %v308
    %v466 = vunpack.c.l.b16 %v309
    %v467 = vunpack.c.h.b16 %v309
    %v468 = vunpack.c.l.b16 %v310
    %v469 = vunpack.c.h.b16 %v310
    %v470 = vunpack.c.l.b16 %v311
    %v471 = vunpack.c.h.b16 %v311
    %v472 = vunpack.c.l.b16 %v312
    %v473 = vunpack.c.h.b16 %v312
    %v474 = vunpack.c.l.b16 %v313
    %v475 = vunpack.c.h.b16 %v313
    %v476 = vunpack.c.l.b16 %v314
    %v477 = vunpack.c.h.b16 %v314
    %v478 = vunpack.c.l.b16 %v315
    %v479 = vunpack.c.h.b16 %v315
    %v480 = vunpack.c.l.b16 %v316
    %v481 = vunpack.c.h.b16 %v316
    %v482 = vunpack.c.l.b16 %v317
    %v483 = vunpack.c.h.b16 %v317
    %v484 = vunpack.c.l.b16 %v318
    %v485 = vunpack.c.h.b16 %v318
    %v486 = vunpack.c.l.b16 %v319
    %v487 = vunpack.c.h.b16 %v319
    %v488 = vunpack.c.l.b16 %v320
    %v489 = vunpack.c.h.b16 %v320
    %v490 = vunpack.c.l.b16 %v321
    %v491 = vunpack.c.h.b16 %v321
    %v492 = vunpack.c.l.b16 %v322
    %v493 = vunpack.c.h.b16 %v322
    %v494 = vunpack.c.l.b16 %v323
    %v495 = vunpack.c.h.b16 %v323
    %v496 = vunpack.c.l.b16 %v324
    %v497 = vunpack.c.h.b16 %v324
    %v498 = vunpack.c.l.b16 %v325
    %v499 = vunpack.c.h.b16 %v325
    %v500 = vunpack.c.l.b16 %v326
    %v501 = vunpack.c.h.b16 %v326
    %v502 = vunpack.c.l.b16 %v327
    %v503 = vunpack.c.h.b16 %v327
    %v504 = vunpack.c.l.b16 %v328
    %v505 = vunpack.c.h.b16 %v328
    %v506 = vunpack.c.l.b16 %v329
    %v507 = vunpack.c.h.b16 %v329
    %v508 = vunpack.c.l.b16 %v330
    %v509 = vunpack.c.h.b16 %v330
    %v510 = vunpack.c.l.b16 %v331
    %v511 = vunpack.c.h.b16 %v331
    %v512 = vunpack.c.l.b16 %v332
    %v513 = vunpack.c.h.b16 %v332
    %v514 = vunpack.c.l.b16 %v333
    %v515 = vunpack.c.h.b16 %v333
    %v516 = vunpack.c.l.b16 %v334
    %v517 = vunpack.c.h.b16 %v334
    %v518 = vunpack.c.l.b16 %v335
    %v519 = vunpack.c.h.b16 %v335
    %v520 = vunpack.c.l.b16 %v336
    %v521 = vunpack.c.h.b16 %v336
    %v522 = vunpack.c.l.b16 %v337
    %v523 = vunpack.c.h.b16 %v337
    %v524 = vunpack.c.l.b16 %v338
    %v525 = vunpack.c.h.b16 %v338
    %v526 = vunpack.c.l.b16 %v339
    %v527 = vunpack.c.h.b16 %v339
    %v528 = vunpack.c.l.b16 %v340
    %v529 = vunpack.c.h.b16 %v340
    %v530 = vunpack.c.l.b16 %v341
    %v531 = vunpack.c.h.b16 %v341
    %v532 = vunpack.c.l.b16 %v342
    %v533 = vunpack.c.h.b16 %v342
    %v534 = vunpack.c.l.b16 %v343
    %v535 = vunpack.c.h.b16 %v343
    %v536 = vpack.c.b16 %v410, %v408
    %v537 = vpack.c.b16 %v411, %v409
    %v538 = vpack.c.b16 %v414, %v412
    %v539 = vpack.c.b16 %v415, %v413
    %v540 = vpack.c.b16 %v418, %v416
    %v541 = vpack.c.b16 %v419, %v417
    %v542 = vpack.c.b16 %v422, %v420
    %v543 = vpack.c.b16 %v423, %v421
    %v544 = vpack.c.b16 %v426, %v424
    %v545 = vpack.c.b16 %v427, %v425
    %v546 = vpack.c.b16 %v430, %v428
    %v547 = vpack.c.b16 %v431, %v429
    %v548 = vpack.c.b16 %v434, %v432
    %v549 = vpack.c.b16 %v435, %v433
    %v550 = vpack.c.b16 %v438, %v436
    %v551 = vpack.c.b16 %v439, %v437
    %v552 = vpack.c.b16 %v442, %v440
    %v553 = vpack.c.b16 %v443, %v441
    %v554 = vpack.c.b16 %v446, %v444
    %v555 = vpack.c.b16 %v447, %v445
    %v556 = vpack.c.b16 %v450, %v448
    %v557 = vpack.c.b16 %v451, %v449
    %v558 = vpack.c.b16 %v454, %v452
    %v559 = vpack.c.b16 %v455, %v453
    %v560 = vpack.c.b16 %v458, %v456
    %v561 = vpack.c.b16 %v459, %v457
    %v562 = vpack.c.b16 %v462, %v460
    %v563 = vpack.c.b16 %v463, %v461
    %v564 = vpack.c.b16 %v466, %v464
    %v565 = vpack.c.b16 %v467, %v465
    %v566 = vpack.c.b16 %v470, %v468
    %v567 = vpack.c.b16 %v471, %v469
    %v568 = vpack.c.b16 %v474, %v472
    %v569 = vpack.c.b16 %v475, %v473
    %v570 = vpack.c.b16 %v478, %v476
    %v571 = vpack.c.b16 %v479, %v477
    %v572 = vpack.c.b16 %v482, %v480
    %v573 = vpack.c.b16 %v483, %v481
    %v574 = vpack.c.b16 %v486, %v484
    %v575 = vpack.c.b16 %v487, %v485
    %v576 = vpack.c.b16 %v490, %v488
    %v577 = vpack.c.b16 %v491, %v489
    %v578 = vpack.c.b16 %v494, %v492
    %v579 = vpack.c.b16 %v495, %v493
    %v580 = vpack.c.b16 %v498, %v496
    %v581 = vpack.c.b16 %v499, %v497
    %v582 = vpack.c.b16 %v502, %v500
    %v583 = vpack.c.b16 %v503, %v501
    %v584 = vpack.c.b16 %v506, %v504
    %v585 = vpack.c.b16 %v507, %v505
    %v586 = vpack.c.b16 %v510, %v508
    %v587 = vpack.c.b16 %v511, %v509
    %v588 = vpack.c.b16 %v514, %v512
    %v589 = vpack.c.b16 %v515, %v513
    %v590 = vpack.c.b16 %v518, %v516
    %v591 = vpack.c.b16 %v519, %v517
    %v592 = vpack.c.b16 %v522, %v520
    %v593 = vpack.c.b16 %v523, %v521
    %v594 = vpack.c.b16 %v526, %v524
    %v595 = vpack.c.b16 %v527, %v525
    %v596 = vpack.c.b16 %v530, %v528
    %v597 = vpack.c.b16 %v531, %v529
    %v598 = vpack.c.b16 %v534, %v532
    %v599 = vpack.c.b16 %v535, %v533
    %664 = vmatprep.subr.bf16.mxu0 %v551
    %665 = vmatpush1.bf16.msra.mxu0 %v550
    %666 = vmatprep.subr.bf16.mxu0 %v549
    %667 = vmatpush1.bf16.msra.mxu0 %v548
    %668 = vmatprep.subr.bf16.mxu0 %v547
    %669 = vmatpush1.bf16.msra.mxu0 %v546
    %670 = vmatprep.subr.bf16.mxu0 %v545
    %671 = vmatpush1.bf16.msra.mxu0 %v544
    %672 = vmatprep.subr.bf16.mxu0 %v543
    %673 = vmatpush1.bf16.msra.mxu0 %v542
    %674 = vmatprep.subr.bf16.mxu0 %v541
    %675 = vmatpush1.bf16.msra.mxu0 %v540
    %676 = vmatprep.subr.bf16.mxu0 %v539
    %677 = vmatpush1.bf16.msra.mxu0 %v538
    %678 = vmatprep.subr.bf16.mxu0 %v537
    %679 = vmatpush1.bf16.msra.mxu0 %v536
    %680 = vmatprep.subr.bf16.mxu0 %v567
    %681 = vmatpush2.bf16.msra.mxu0 %v566
    %682 = vmatprep.subr.bf16.mxu0 %v565
    %683 = vmatpush2.bf16.msra.mxu0 %v564
    %684 = vmatprep.subr.bf16.mxu0 %v563
    %685 = vmatpush2.bf16.msra.mxu0 %v562
    %686 = vmatprep.subr.bf16.mxu0 %v561
    %687 = vmatpush2.bf16.msra.mxu0 %v560
    %688 = vmatprep.subr.bf16.mxu0 %v559
    %689 = vmatpush2.bf16.msra.mxu0 %v558
    %690 = vmatprep.subr.bf16.mxu0 %v557
    %691 = vmatpush2.bf16.msra.mxu0 %v556
    %692 = vmatprep.subr.bf16.mxu0 %v555
    %693 = vmatpush2.bf16.msra.mxu0 %v554
    %694 = vmatprep.subr.bf16.mxu0 %v553
    %695 = vmatpush2.bf16.msra.mxu0 %v552
    %696 = vmatprep.mubr.bf16.mxu0 %v277
    %697 = vmatmul.mubr.bf16.gmra.mxu0 %v276
    %v698 = vpop.f32.mrf.mxu0
    %v699 = vadd.f32 0.0, %v698
    %v700 = vpop.f32.mrf.mxu0
    %v701 = vadd.f32 0.0, %v700
    %v702 = vpop.f32.mrf.mxu0
    %v703 = vadd.f32 0.0, %v702
    %v704 = vpop.f32.mrf.mxu0
    %v705 = vadd.f32 0.0, %v704
    %706 = vdwg.mxu0
    %707 = vmatprep.subr.bf16.mxu0 %v583
    %708 = vmatpush1.bf16.msra.mxu0 %v582
    %709 = vmatprep.subr.bf16.mxu0 %v581
    %710 = vmatpush1.bf16.msra.mxu0 %v580
    %711 = vmatprep.subr.bf16.mxu0 %v579
    %712 = vmatpush1.bf16.msra.mxu0 %v578
    %713 = vmatprep.subr.bf16.mxu0 %v577
    %714 = vmatpush1.bf16.msra.mxu0 %v576
    %715 = vmatprep.subr.bf16.mxu0 %v575
    %716 = vmatpush1.bf16.msra.mxu0 %v574
    %717 = vmatprep.subr.bf16.mxu0 %v573
    %718 = vmatpush1.bf16.msra.mxu0 %v572
    %719 = vmatprep.subr.bf16.mxu0 %v571
    %720 = vmatpush1.bf16.msra.mxu0 %v570
    %721 = vmatprep.subr.bf16.mxu0 %v569
    %722 = vmatpush1.bf16.msra.mxu0 %v568
    %723 = vmatprep.subr.bf16.mxu0 %v599
    %724 = vmatpush2.bf16.msra.mxu0 %v598
    %725 = vmatprep.subr.bf16.mxu0 %v597
    %726 = vmatpush2.bf16.msra.mxu0 %v596
    %727 = vmatprep.subr.bf16.mxu0 %v595
    %728 = vmatpush2.bf16.msra.mxu0 %v594
    %729 = vmatprep.subr.bf16.mxu0 %v593
    %730 = vmatpush2.bf16.msra.mxu0 %v592
    %731 = vmatprep.subr.bf16.mxu0 %v591
    %732 = vmatpush2.bf16.msra.mxu0 %v590
    %733 = vmatprep.subr.bf16.mxu0 %v589
    %734 = vmatpush2.bf16.msra.mxu0 %v588
    %735 = vmatprep.subr.bf16.mxu0 %v587
    %736 = vmatpush2.bf16.msra.mxu0 %v586
    %737 = vmatprep.subr.bf16.mxu0 %v585
    %738 = vmatpush2.bf16.msra.mxu0 %v584
    %739 = vmatprep.mubr.bf16.mxu0 %v279
    %740 = vmatmul.mubr.bf16.gmra.mxu0 %v278
    %v741 = vpop.f32.mrf.mxu0
    %v742 = vadd.f32 %v699, %v741
    %v743 = vpop.f32.mrf.mxu0
    %v744 = vadd.f32 %v701, %v743
    %v745 = vpop.f32.mrf.mxu0
    %v746 = vadd.f32 %v703, %v745
    %v747 = vpop.f32.mrf.mxu0
    %v748 = vadd.f32 %v705, %v747
    %749 = vdwg.mxu0
    %v750 = vpack.c.bf16 %v746, %v742
    %v751 = vpack.c.bf16 %v748, %v744
    %v752 = vld [vmem:[%s4] sm:$0x3]
    %v755 = vunpack.c.l.s4 1966171168
    %v756 = vunpack.c.0.s8 %v755
    %v757 = vlaneseq
    %v758 = vshrl.u32 %v757, 7
    %v759 = vsub.s32 %v756, %v758
    %v760 = vrot.slane %v752, %v759
    %v761 = vcombine.high %v760, %v760
    %v763 = vunpack.c.l.s4 1966171168
    %v764 = vunpack.c.0.s8 %v763
    %v765 = vlaneseq
    %v766 = vshrl.u32 %v765, 7
    %v767 = vsub.s32 %v764, %v766
    %v768 = vrot.slane %v760, %v767
    %v770 = vunpack.c.l.s4 1966171168
    %v771 = vunpack.c.0.s8 %v770
    %v772 = vlaneseq
    %v773 = vshrl.u32 %v772, 7
    %v774 = vsub.s32 %v771, %v773
    %v775 = vrot.slane %v761, %v774
    %v777 = vpack.i.b16 %v768, %v768
    %v779 = vlaneseq
    %v780 = vshrl.u32 %v779, 7
    %v781 = vsub.s32 0, %v780
    %v782 = vrot.slane %v777, %v781
    %v784 = vpack.i.b16 %v775, %v775
    %v786 = vlaneseq
    %v787 = vshrl.u32 %v786, 7
    %v788 = vsub.s32 0, %v787
    %v789 = vrot.slane %v784, %v788
    %v790 = vadd.bf16 %v750, %v782
    %v791 = vadd.bf16 %v751, %v789
    %v792 = vmul.bf16 %v790, 1009007652
    %v793 = vmul.bf16 %v791, 1009007652
    %v794 = vmax.bf16 %v790, %v792
    %v795 = vmax.bf16 %v791, %v793
    %v796 = vld [vmem:[#allocation7] sm:$0xf]
    %v797 = vld [vmem:[#allocation7 + $0x4] sm:$0xf]
    %v798 = vld [vmem:[#allocation7 + $0x8] sm:$0xf]
    %v799 = vld [vmem:[#allocation7 + $0xc] sm:$0xf]
    %v800 = vld [vmem:[#allocation7 + $0x10] sm:$0xf]
    %v801 = vld [vmem:[#allocation7 + $0x14] sm:$0xf]
    %v802 = vld [vmem:[#allocation7 + $0x18] sm:$0xf]
    %v803 = vld [vmem:[#allocation7 + $0x1c] sm:$0xf]
    %v804 = vld [vmem:[#allocation7 + $0x20] sm:$0xf]
    %v805 = vld [vmem:[#allocation7 + $0x24] sm:$0xf]
    %v806 = vld [vmem:[#allocation7 + $0x28] sm:$0xf]
    %v807 = vld [vmem:[#allocation7 + $0x2c] sm:$0xf]
    %v808 = vld [vmem:[#allocation7 + $0x30] sm:$0xf]
    %v809 = vld [vmem:[#allocation7 + $0x34] sm:$0xf]
    %v810 = vld [vmem:[#allocation7 + $0x38] sm:$0xf]
    %v811 = vld [vmem:[#allocation7 + $0x3c] sm:$0xf]
    %v812 = vld [vmem:[#allocation7 + $0x40] sm:$0xf]
    %v813 = vld [vmem:[#allocation7 + $0x44] sm:$0xf]
    %v814 = vld [vmem:[#allocation7 + $0x48] sm:$0xf]
    %v815 = vld [vmem:[#allocation7 + $0x4c] sm:$0xf]
    %v816 = vld [vmem:[#allocation7 + $0x50] sm:$0xf]
    %v817 = vld [vmem:[#allocation7 + $0x54] sm:$0xf]
    %v818 = vld [vmem:[#allocation7 + $0x58] sm:$0xf]
    %v819 = vld [vmem:[#allocation7 + $0x5c] sm:$0xf]
    %v820 = vld [vmem:[#allocation7 + $0x60] sm:$0xf]
    %v821 = vld [vmem:[#allocation7 + $0x64] sm:$0xf]
    %v822 = vld [vmem:[#allocation7 + $0x68] sm:$0xf]
    %v823 = vld [vmem:[#allocation7 + $0x6c] sm:$0xf]
    %v824 = vld [vmem:[#allocation7 + $0x70] sm:$0xf]
    %v825 = vld [vmem:[#allocation7 + $0x74] sm:$0xf]
    %v826 = vld [vmem:[#allocation7 + $0x78] sm:$0xf]
    %v827 = vld [vmem:[#allocation7 + $0x7c] sm:$0xf]
    %v860 = vunpack.c.l.b16 %v796
    %v861 = vunpack.c.l.b16 %v797
    %v862 = vunpack.c.l.b16 %v798
    %v863 = vunpack.c.l.b16 %v799
    %v864 = vunpack.c.l.b16 %v800
    %v865 = vunpack.c.l.b16 %v801
    %v866 = vunpack.c.l.b16 %v802
    %v867 = vunpack.c.l.b16 %v803
    %v868 = vunpack.c.l.b16 %v804
    %v869 = vunpack.c.l.b16 %v805
    %v870 = vunpack.c.l.b16 %v806
    %v871 = vunpack.c.l.b16 %v807
    %v872 = vunpack.c.l.b16 %v808
    %v873 = vunpack.c.l.b16 %v809
    %v874 = vunpack.c.l.b16 %v810
    %v875 = vunpack.c.l.b16 %v811
    %v876 = vunpack.c.l.b16 %v812
    %v877 = vunpack.c.l.b16 %v813
    %v878 = vunpack.c.l.b16 %v814
    %v879 = vunpack.c.l.b16 %v815
    %v880 = vunpack.c.l.b16 %v816
    %v881 = vunpack.c.l.b16 %v817
    %v882 = vunpack.c.l.b16 %v818
    %v883 = vunpack.c.l.b16 %v819
    %v884 = vunpack.c.l.b16 %v820
    %v885 = vunpack.c.l.b16 %v821
    %v886 = vunpack.c.l.b16 %v822
    %v887 = vunpack.c.l.b16 %v823
    %v888 = vunpack.c.l.b16 %v824
    %v889 = vunpack.c.l.b16 %v825
    %v890 = vunpack.c.l.b16 %v826
    %v891 = vunpack.c.l.b16 %v827
    %v892 = vpack.c.b16 %v861, %v860
    %v893 = vpack.c.b16 %v863, %v862
    %v894 = vpack.c.b16 %v865, %v864
    %v895 = vpack.c.b16 %v867, %v866
    %v896 = vpack.c.b16 %v869, %v868
    %v897 = vpack.c.b16 %v871, %v870
    %v898 = vpack.c.b16 %v873, %v872
    %v899 = vpack.c.b16 %v875, %v874
    %v900 = vpack.c.b16 %v877, %v876
    %v901 = vpack.c.b16 %v879, %v878
    %v902 = vpack.c.b16 %v881, %v880
    %v903 = vpack.c.b16 %v883, %v882
    %v904 = vpack.c.b16 %v885, %v884
    %v905 = vpack.c.b16 %v887, %v886
    %v906 = vpack.c.b16 %v889, %v888
    %v907 = vpack.c.b16 %v891, %v890
    %924 = vmatprep.subr.bf16.mxu0 0
    %925 = vmatpush1.bf16.msra.mxu0 %v899
    %926 = vmatprep.subr.bf16.mxu0 0
    %927 = vmatpush1.bf16.msra.mxu0 %v898
    %928 = vmatprep.subr.bf16.mxu0 0
    %929 = vmatpush1.bf16.msra.mxu0 %v897
    %930 = vmatprep.subr.bf16.mxu0 0
    %931 = vmatpush1.bf16.msra.mxu0 %v896
    %932 = vmatprep.subr.bf16.mxu0 0
    %933 = vmatpush1.bf16.msra.mxu0 %v895
    %934 = vmatprep.subr.bf16.mxu0 0
    %935 = vmatpush1.bf16.msra.mxu0 %v894
    %936 = vmatprep.subr.bf16.mxu0 0
    %937 = vmatpush1.bf16.msra.mxu0 %v893
    %938 = vmatprep.subr.bf16.mxu0 0
    %939 = vmatpush1.bf16.msra.mxu0 %v892
    %940 = vmatprep.subr.bf16.mxu0 0
    %941 = vmatpush2.bf16.msra.mxu0 %v907
    %942 = vmatprep.subr.bf16.mxu0 0
    %943 = vmatpush2.bf16.msra.mxu0 %v906
    %944 = vmatprep.subr.bf16.mxu0 0
    %945 = vmatpush2.bf16.msra.mxu0 %v905
    %946 = vmatprep.subr.bf16.mxu0 0
    %947 = vmatpush2.bf16.msra.mxu0 %v904
    %948 = vmatprep.subr.bf16.mxu0 0
    %949 = vmatpush2.bf16.msra.mxu0 %v903
    %950 = vmatprep.subr.bf16.mxu0 0
    %951 = vmatpush2.bf16.msra.mxu0 %v902
    %952 = vmatprep.subr.bf16.mxu0 0
    %953 = vmatpush2.bf16.msra.mxu0 %v901
    %954 = vmatprep.subr.bf16.mxu0 0
    %955 = vmatpush2.bf16.msra.mxu0 %v900
    %956 = vmatprep.mubr.bf16.mxu0 %v795
    %957 = vmatmul.mubr.bf16.gmra.mxu0 %v794
    %v958 = vpop.f32.mrf.mxu0
    %v959 = vadd.f32 0.0, %v958
    %v960 = vpop.f32.mrf.mxu0
    %v961 = vpop.f32.mrf.mxu0
    %v962 = vadd.f32 0.0, %v961
    %v963 = vpop.f32.mrf.mxu0
    %964 = vdwg.mxu0
    %v965 = vpack.c.bf16 %v962, %v959
    %v966 = vld [vmem:[%s6] sm:$0x1]
    %v968 = vpack.i.b16 %v966, %v966
    %v970 = vlaneseq
    %v971 = vshrl.u32 %v970, 7
    %v972 = vsub.s32 0, %v971
    %v973 = vrot.slane %v968, %v972
    %v974 = vadd.bf16 %v965, %v973
    %v975 = vmul.bf16 %v974, 1009007652
    %v976 = vmax.bf16 %v974, %v975
    %v977 = vld [vmem:[#allocation8] sm:$0xf]
    %v978 = vld [vmem:[#allocation8 + $0x4] sm:$0xf]
    %v979 = vld [vmem:[#allocation8 + $0x8] sm:$0xf]
    %v980 = vld [vmem:[#allocation8 + $0xc] sm:$0xf]
    %v981 = vld [vmem:[#allocation8 + $0x10] sm:$0xf]
    %v982 = vld [vmem:[#allocation8 + $0x14] sm:$0xf]
    %v983 = vld [vmem:[#allocation8 + $0x18] sm:$0xf]
    %v984 = vld [vmem:[#allocation8 + $0x1c] sm:$0xf]
    %v985 = vld [vmem:[#allocation8 + $0x20] sm:$0xf]
    %v986 = vld [vmem:[#allocation8 + $0x24] sm:$0xf]
    %v987 = vld [vmem:[#allocation8 + $0x28] sm:$0xf]
    %v988 = vld [vmem:[#allocation8 + $0x2c] sm:$0xf]
    %v989 = vld [vmem:[#allocation8 + $0x30] sm:$0xf]
    %v990 = vld [vmem:[#allocation8 + $0x34] sm:$0xf]
    %v991 = vld [vmem:[#allocation8 + $0x38] sm:$0xf]
    %v992 = vld [vmem:[#allocation8 + $0x3c] sm:$0xf]
    %v1009 = vunpack.c.l.b16 %v977
    %v1010 = vunpack.c.l.b16 %v978
    %v1011 = vunpack.c.l.b16 %v979
    %v1012 = vunpack.c.l.b16 %v980
    %v1013 = vunpack.c.l.b16 %v981
    %v1014 = vunpack.c.l.b16 %v982
    %v1015 = vunpack.c.l.b16 %v983
    %v1016 = vunpack.c.l.b16 %v984
    %v1017 = vunpack.c.l.b16 %v985
    %v1018 = vunpack.c.l.b16 %v986
    %v1019 = vunpack.c.l.b16 %v987
    %v1020 = vunpack.c.l.b16 %v988
    %v1021 = vunpack.c.l.b16 %v989
    %v1022 = vunpack.c.l.b16 %v990
    %v1023 = vunpack.c.l.b16 %v991
    %v1024 = vunpack.c.l.b16 %v992
    %v1025 = vpack.c.b16 %v1010, %v1009
    %v1026 = vpack.c.b16 %v1012, %v1011
    %v1027 = vpack.c.b16 %v1014, %v1013
    %v1028 = vpack.c.b16 %v1016, %v1015
    %v1029 = vpack.c.b16 %v1018, %v1017
    %v1030 = vpack.c.b16 %v1020, %v1019
    %v1031 = vpack.c.b16 %v1022, %v1021
    %v1032 = vpack.c.b16 %v1024, %v1023
    %1041 = vmatprep.subr.bf16.mxu0 0
    %1042 = vmatpush1.bf16.msra.mxu0 %v1032
    %1043 = vmatprep.subr.bf16.mxu0 0
    %1044 = vmatpush1.bf16.msra.mxu0 %v1031
    %1045 = vmatprep.subr.bf16.mxu0 0
    %1046 = vmatpush1.bf16.msra.mxu0 %v1030
    %1047 = vmatprep.subr.bf16.mxu0 0
    %1048 = vmatpush1.bf16.msra.mxu0 %v1029
    %1049 = vmatprep.subr.bf16.mxu0 0
    %1050 = vmatpush1.bf16.msra.mxu0 %v1028
    %1051 = vmatprep.subr.bf16.mxu0 0
    %1052 = vmatpush1.bf16.msra.mxu0 %v1027
    %1053 = vmatprep.subr.bf16.mxu0 0
    %1054 = vmatpush1.bf16.msra.mxu0 %v1026
    %1055 = vmatprep.subr.bf16.mxu0 0
    %1056 = vmatpush1.bf16.msra.mxu0 %v1025
    %1057 = vmatprep.subr.bf16.mxu0 0
    %1058 = vmatpush2.bf16.msra.mxu0 0
    %1059 = vmatprep.subr.bf16.mxu0 0
    %1060 = vmatpush2.bf16.msra.mxu0 0
    %1061 = vmatprep.subr.bf16.mxu0 0
    %1062 = vmatpush2.bf16.msra.mxu0 0
    %1063 = vmatprep.subr.bf16.mxu0 0
    %1064 = vmatpush2.bf16.msra.mxu0 0
    %1065 = vmatprep.subr.bf16.mxu0 0
    %1066 = vmatpush2.bf16.msra.mxu0 0
    %1067 = vmatprep.subr.bf16.mxu0 0
    %1068 = vmatpush2.bf16.msra.mxu0 0
    %1069 = vmatprep.subr.bf16.mxu0 0
    %1070 = vmatpush2.bf16.msra.mxu0 0
    %1071 = vmatprep.subr.bf16.mxu0 0
    %1072 = vmatpush2.bf16.msra.mxu0 0
    %1073 = vmatprep.mubr.bf16.mxu0 0
    %1074 = vmatmul.mubr.bf16.gmra.mxu0 %v976
    %v1075 = vpop.f32.mrf.mxu0
    %v1076 = vadd.f32 0.0, %v1075
    %v1077 = vpop.f32.mrf.mxu0
    %v1078 = vpop.f32.mrf.mxu0
    %v1079 = vadd.f32 0.0, %v1078
    %v1080 = vpop.f32.mrf.mxu0
    %1081 = vdwg.mxu0
    %v1082 = vpack.c.bf16 %v1079, %v1076
    %v1083 = vld [vmem:[%s8] sm:$0x1]
    %v1085 = vpack.i.b16 %v1083, %v1083
    %v1087 = vlaneseq
    %v1088 = vshrl.u32 %v1087, 7
    %v1089 = vsub.s32 0, %v1088
    %v1090 = vrot.slane %v1085, %v1089
    %v1091 = vadd.bf16 %v1082, %v1090
    %v1093 = vunpack.c.l.b16 %v1091
    %v1094 = vunpack.c.h.b16 %v1091
    %v1095 = vpack.c.b16 %v1093, %v1093
    %v1096 = vpack.c.b16 %v1094, %v1094
    %1099 = vst [vmem:[#allocation10] sm:$0xf] %v1095
    %1100 = vst [vmem:[#allocation10 + $0x4] sm:$0xf] %v1096
    // Predicated region
    $region54: #{tpu_custom_call.1} parent=1 // pred_check
      _
    $region55: #{tpu_custom_call.1} parent=1 // pred_check_branch
      %1102 = sbr.rel (0) target = $region57
    $region56: #{tpu_custom_call.1} parent=1 // pred_region
      %s1104 = ssub.s32 128, 128
      %1105 = vsyncadd [#allocation4], %s1104
      %s1106 = sshll.u32 [#allocation10], 4
      %s1107 = int_to_ptr.vmem [resolvable:$true] %s1106
      %1112 = dma.vmem_to_hbm [thread:$0]  %s1107, 128, %s9, [#allocation4], 64, 64, 4
    $region57: #{tpu_custom_call.1} parent=1 // pred_fallthru
      _
    // Predicated region
    $region58: #{tpu_custom_call.1} parent=1 // pred_check
      _
    $region59: #{tpu_custom_call.1} parent=1 // pred_check_branch
      %1114 = sbr.rel (0) target = $region61
    $region60: #{tpu_custom_call.1} parent=1 // pred_region
      %1115 = dma.done [#allocation4], 128
    $region61: #{tpu_custom_call.1} parent=1 // pred_fallthru
      _
    %1116 = vsyncpa [#allocation3], 1
    %1117 = vsyncpa [#allocation6], 1
    %1118 = vsyncpa [#allocation9], 1
    %1119 = vsyncpa [#allocation4], 1

</llo_original>
